<compile_context>
chip_gen: v5e
topology: v5e:2x2
jax: 0.10.0
libtpu: 0.0.40
codegen_flags: <defaults>
</compile_context>

<pallas_src>
import functools

import jax
import jax.numpy as jnp
from jax.experimental import pallas as pl
from jax.experimental.pallas import tpu as pltpu


def b3p_kernel(x_ref, w1_ref, b1_ref, w2_ref, b2_ref, o_ref, *, inv_s):
    # ---- mean over the sequence axis: f32 sum accumulation + one VPU scale.
    # (x may arrive as bf16; the DMA stays in the input dtype, accumulation is f32.)
    x = x_ref[...]                                               # (TB, S, D)
    xm = jnp.sum(x.astype(jnp.float32), axis=1) * inv_s          # (TB, D)

    # ---- fc1 on the MXU + bias + ReLU.
    h = jnp.dot(xm, w1_ref[...].astype(jnp.float32),
                preferred_element_type=jnp.float32)              # (TB, H)
    h = jnp.maximum(h + b1_ref[...].astype(jnp.float32), 0.0)

    # ---- fc2 (output width 1): VPU multiply + XLU lane reduction, no MXU.
    y = jnp.sum(h * w2_ref[...].astype(jnp.float32),
                axis=-1, keepdims=True)                          # (TB, 1)
    y = jnp.maximum(y + b2_ref[...].astype(jnp.float32), 0.0)

    # ---- sigmoid head.  y >= 0 after ReLU, so exp(-y) in (0, 1]: no overflow.
    o_ref[...] = (1.0 / (1.0 + jnp.exp(-y))).astype(o_ref.dtype)


def b3p_classifier(x, w1, b1, w2, b2, *, max_batch_tile=256):
    """x: (B, S, D); w1: (D, H); b1: (1, H); w2: (H, 1); b2: (1, 1)."""
    B, S, D = x.shape
    Dw, H = w1.shape
    assert Dw == D
    assert w2.shape == (H, 1) and b2.shape == (1, 1)
    O = 1

    # Store fc2 weight lane-major (1, H) for the VPU multiply/reduce path.
    w2_row = jnp.reshape(w2, (1, H))

    # ---- pick the batch tile.  Budget the double-buffered x tile against the
    # smallest scoped-VMEM generation (v7x: 64 MiB physical, 32 MiB default),
    # leaving room for the resident weights and scratch.
    bytes_per_row = S * D * x.dtype.itemsize
    x_tile_budget = 32 << 20                      # 2 * TB*S*D*itemsize <= 32 MiB
    max_tb = max(8, (x_tile_budget // (2 * bytes_per_row)) // 8 * 8)
    tb = min(max_batch_tile, max_tb)
    if B <= tb:
        tb = B                                    # single full-extent batch block
        b_pad = B
    else:
        b_pad = pl.cdiv(B, tb) * tb               # pad batch to a whole number of tiles
    if b_pad != B:
        x = jnp.pad(x, ((0, b_pad - B), (0, 0), (0, 0)))

    grid = (b_pad // tb,)

    cost = pl.CostEstimate(
        flops=2 * B * D * H + 2 * B * H * O,
        transcendentals=B * O,
        bytes_accessed=(B * S * D * x.dtype.itemsize
                        + D * H * w1.dtype.itemsize
                        + (H + H + 1) * 4
                        + B * O * 4),
    )

    out = pl.pallas_call(
        functools.partial(b3p_kernel, inv_s=1.0 / S),
        out_shape=jax.ShapeDtypeStruct((b_pad, O), jnp.float32),
        grid=grid,
        in_specs=[
            pl.BlockSpec((tb, S, D), lambda i: (i, 0, 0)),   # x: tiled over batch
            pl.BlockSpec((D, H),     lambda i: (0, 0)),      # W1: resident
            pl.BlockSpec((1, H),     lambda i: (0, 0)),      # b1: resident
            pl.BlockSpec((1, H),     lambda i: (0, 0)),      # W2 (lane vector): resident
            pl.BlockSpec((1, 1),     lambda i: (0, 0)),      # b2: resident
        ],
        out_specs=pl.BlockSpec((tb, O), lambda i: (i, 0)),
        compiler_params=pltpu.CompilerParams(
            dimension_semantics=("parallel",),               # shards batch tiles across TCs (v7x)
            vmem_limit_bytes=48 << 20,
        ),
        cost_estimate=cost,
    )(x, w1, b1, w2_row, b2)

    return out[:B]


def reference(x, w1, b1, w2, b2):
    xm = jnp.mean(x, axis=1)
    h = jnp.maximum(xm @ w1 + b1, 0.0)
    y = jnp.maximum(h @ w2 + b2, 0.0)
    return jax.nn.sigmoid(y)


if __name__ == "__main__":
    # Small shapes consistent with the module's forward.
    D, H, O = 512, 128, 1  # input_size, hidden_size, output_size

    key = jax.random.PRNGKey(0)
    kx, kw1, kb1, kw2, kb2, kx2 = jax.random.split(key, 6)

    # nn.Linear weights stored pre-transposed as [in, out].
    w1 = jax.random.normal(kw1, (D, H), dtype=jnp.float32) * 0.05
    b1 = jax.random.normal(kb1, (1, H), dtype=jnp.float32) * 0.05
    w2 = jax.random.normal(kw2, (H, O), dtype=jnp.float32) * 0.05
    b2 = jax.random.normal(kb2, (1, O), dtype=jnp.float32) * 0.05

    # --- case 1: toy shapes, single batch tile (grid of 1).
    B, S = 4, 8
    x = jax.random.normal(kx, (B, S, D), dtype=jnp.float32)
    out = jax.block_until_ready(b3p_classifier(x, w1, b1, w2, b2))
    ref = reference(x, w1, b1, w2, b2)
    assert out.shape == (B, O), out.shape
    assert jnp.allclose(out, ref, atol=1e-5, rtol=1e-5)

    # --- case 2: force a multi-step grid over batch (exercises pipelining +
    # the padded-batch path) with a small batch tile.
    B2, S2 = 40, 8
    x2 = jax.random.normal(kx2, (B2, S2, D), dtype=jnp.float32)
    out2 = jax.block_until_ready(
        b3p_classifier(x2, w1, b1, w2, b2, max_batch_tile=16))
    ref2 = reference(x2, w1, b1, w2, b2)
    assert out2.shape == (B2, O), out2.shape
    assert jnp.allclose(out2, ref2, atol=1e-5, rtol=1e-5)

    print("KERNEL_OK")
</pallas_src>

<mosaic_0001>
module attributes {stable_mosaic.version = 11 : i64} {
  func.func @b3p_kernel(%arg0: i32, %arg1: memref<4x8x512xf32, #tpu.memory_space<vmem>>, %arg2: memref<512x128xf32, #tpu.memory_space<vmem>>, %arg3: memref<1x128xf32, #tpu.memory_space<vmem>>, %arg4: memref<1x128xf32, #tpu.memory_space<vmem>>, %arg5: memref<1x1xf32, #tpu.memory_space<vmem>>, %arg6: memref<4x1xf32, #tpu.memory_space<vmem>>) attributes {dimension_semantics = [#tpu.dimension_semantics<parallel>], iteration_bounds = array<i64: 1>, scalar_prefetch = 0 : i64, scratch_operands = 0 : i64, tpu.core_type = #tpu.core_type<tc>, window_params = [{transform_indices = @transform_0, window_bounds = array<i64: 4, 8, 512>}, {pipeline_mode = #tpu.pipeline_mode<synchronous>, transform_indices = @transform_1, window_bounds = array<i64: 512, 128>}, {pipeline_mode = #tpu.pipeline_mode<synchronous>, transform_indices = @transform_2, window_bounds = array<i64: 1, 128>}, {pipeline_mode = #tpu.pipeline_mode<synchronous>, transform_indices = @transform_3, window_bounds = array<i64: 1, 128>}, {pipeline_mode = #tpu.pipeline_mode<synchronous>, transform_indices = @transform_4, window_bounds = array<i64: 1, 1>}, {transform_indices = @transform_5, window_bounds = array<i64: 4, 1>}]} {
    %c0 = arith.constant 0 : index
    %c0_0 = arith.constant 0 : index
    %c0_1 = arith.constant 0 : index
    %0 = vector.load %arg1[%c0, %c0_0, %c0_1] : memref<4x8x512xf32, #tpu.memory_space<vmem>>, vector<4x8x512xf32>
    %cst = arith.constant dense<0.000000e+00> : vector<4x512xf32>
    %1 = vector.multi_reduction <add>, %0, %cst [1] : vector<4x8x512xf32> to vector<4x512xf32>
    %cst_2 = arith.constant 1.250000e-01 : f32
    %2 = vector.broadcast %cst_2 : f32 to vector<4x512xf32>
    %3 = arith.mulf %1, %2 : vector<4x512xf32>
    %c0_3 = arith.constant 0 : index
    %c0_4 = arith.constant 0 : index
    %4 = vector.load %arg2[%c0_3, %c0_4] : memref<512x128xf32, #tpu.memory_space<vmem>>, vector<512x128xf32>
    %cst_5 = arith.constant dense<0.000000e+00> : vector<4x128xf32>
    %5 = tpu.matmul %3, %4, %cst_5 {dimension_numbers = #tpu.dot_dimension_numbers<[1], [0], [0], [1], [0, 0, 1, 1], [], []>} : vector<4x512xf32>, vector<512x128xf32>, vector<4x128xf32> -> vector<4x128xf32>
    %c0_6 = arith.constant 0 : index
    %c0_7 = arith.constant 0 : index
    %6 = vector.load %arg3[%c0_6, %c0_7] : memref<1x128xf32, #tpu.memory_space<vmem>>, vector<1x128xf32>
    %7 = vector.broadcast %6 : vector<1x128xf32> to vector<4x128xf32>
    %8 = arith.addf %5, %7 : vector<4x128xf32>
    %cst_8 = arith.constant 0.000000e+00 : f32
    %9 = vector.broadcast %cst_8 : f32 to vector<4x128xf32>
    %10 = arith.maximumf %8, %9 : vector<4x128xf32>
    %c0_9 = arith.constant 0 : index
    %c0_10 = arith.constant 0 : index
    %11 = vector.load %arg4[%c0_9, %c0_10] : memref<1x128xf32, #tpu.memory_space<vmem>>, vector<1x128xf32>
    %12 = vector.broadcast %11 : vector<1x128xf32> to vector<4x128xf32>
    %13 = arith.mulf %10, %12 : vector<4x128xf32>
    %cst_11 = arith.constant dense<0.000000e+00> : vector<4xf32>
    %14 = vector.multi_reduction <add>, %13, %cst_11 [1] : vector<4x128xf32> to vector<4xf32>
    %15 = vector.shape_cast %14 : vector<4xf32> to vector<4x1xf32>
    %c0_12 = arith.constant 0 : index
    %c0_13 = arith.constant 0 : index
    %16 = vector.load %arg5[%c0_12, %c0_13] : memref<1x1xf32, #tpu.memory_space<vmem>>, vector<1x1xf32>
    %17 = vector.broadcast %16 : vector<1x1xf32> to vector<4x1xf32>
    %18 = arith.addf %15, %17 : vector<4x1xf32>
    %cst_14 = arith.constant 0.000000e+00 : f32
    %19 = vector.broadcast %cst_14 : f32 to vector<4x1xf32>
    %20 = arith.maximumf %18, %19 : vector<4x1xf32>
    %cst_15 = arith.constant 0.000000e+00 : f32
    %21 = vector.broadcast %cst_15 : f32 to vector<4x1xf32>
    %22 = arith.subf %21, %20 : vector<4x1xf32>
    %23 = math.exp %22 : vector<4x1xf32>
    %cst_16 = arith.constant 1.000000e+00 : f32
    %24 = vector.broadcast %cst_16 : f32 to vector<4x1xf32>
    %25 = arith.addf %24, %23 : vector<4x1xf32>
    %cst_17 = arith.constant 1.000000e+00 : f32
    %26 = vector.broadcast %cst_17 : f32 to vector<4x1xf32>
    %27 = arith.divf %26, %25 : vector<4x1xf32>
    %c0_18 = arith.constant 0 : index
    %c0_19 = arith.constant 0 : index
    %28 = vector.load %arg6[%c0_18, %c0_19] : memref<4x1xf32, #tpu.memory_space<vmem>>, vector<4x1xf32>
    tpu.vector_store %arg6[%c0_18, %c0_19], %27 {strides = array<i32>} : memref<4x1xf32, #tpu.memory_space<vmem>>, vector<4x1xf32>,
    return
  }
  func.func @transform_0(%arg0: i32) -> (i32, i32, i32) {
    %c0_i32 = arith.constant 0 : i32
    %c0_i32_0 = arith.constant 0 : i32
    %c0_i32_1 = arith.constant 0 : i32
    return %arg0, %c0_i32, %c0_i32_0 : i32, i32, i32
  }
  func.func @transform_1(%arg0: i32) -> (i32, i32) {
    %c0_i32 = arith.constant 0 : i32
    %c0_i32_0 = arith.constant 0 : i32
    %c0_i32_1 = arith.constant 0 : i32
    return %c0_i32, %c0_i32_0 : i32, i32
  }
  func.func @transform_2(%arg0: i32) -> (i32, i32) {
    %c0_i32 = arith.constant 0 : i32
    %c0_i32_0 = arith.constant 0 : i32
    %c0_i32_1 = arith.constant 0 : i32
    return %c0_i32, %c0_i32_0 : i32, i32
  }
  func.func @transform_3(%arg0: i32) -> (i32, i32) {
    %c0_i32 = arith.constant 0 : i32
    %c0_i32_0 = arith.constant 0 : i32
    %c0_i32_1 = arith.constant 0 : i32
    return %c0_i32, %c0_i32_0 : i32, i32
  }
  func.func @transform_4(%arg0: i32) -> (i32, i32) {
    %c0_i32 = arith.constant 0 : i32
    %c0_i32_0 = arith.constant 0 : i32
    %c0_i32_1 = arith.constant 0 : i32
    return %c0_i32, %c0_i32_0 : i32, i32
  }
  func.func @transform_5(%arg0: i32) -> (i32, i32) {
    %c0_i32 = arith.constant 0 : i32
    %c0_i32_0 = arith.constant 0 : i32
    return %arg0, %c0_i32 : i32, i32
  }
}

</mosaic_0001>

<llo_original>
// kernel: tpu_custom_call.1
$region0: #{tpu_custom_call.1}
  #allocation0 [shape = 'u32[]', space=smem, size = 0x4, offset = 0x4, fixed_abs, tag = 'smem constant byte address 0x4 - core index']
  #allocation1 [shape = 'u32[72,128]{1,0:T(1,128)}', space=vmem, size = 0x9000, scoped, tag = 'internal scratch']
  #allocation2 [shape = 'f32[1,1]{1,0:T(1,128)S(1)}', space=vmem, size = 0x200, scoped, tag = 'scoped memory for tpu_custom_call.1']
  %s0 = inlined_call_operand.hbm [shape: f32[4,8,512], index: 0, kind: input, shape index: {}]
  %s1 = inlined_call_operand.hbm [shape: f32[512,128], index: 1, kind: input, shape index: {}]
  %s2 = inlined_call_operand.vmem [shape: f32[1,128], index: 2, kind: input, shape index: {}]
  %s3 = inlined_call_operand.vmem [shape: f32[1,128], index: 3, kind: input, shape index: {}]
  %s4 = inlined_call_operand.<no memory space> [shape: f32[1,1], index: 4, kind: input, shape index: {}]
  %s5 = inlined_call_operand.vmem [shape: f32[4,1], index: 5, kind: output, shape index: {}]
  %s6 = sld [smem:[#allocation0]]
  $region38: #{tpu_custom_call.1} parent=0
    _
  %s8 = ssub.s32 1, %s6
  %s9 = scalar_select 0, %s8, %s6
  %v10 = vstv %s4
  %11 = vst [vmem:[#allocation2] sm:$0x1] %v10
  $region1: #{tpu_custom_call.1} parent=0
    #allocation3 [shape = 'u8[65536]{0}', space=vmem, size = 0x10000, scoped, tag = 'input window, operand 0, single buffered']
    #allocation4 [shape = 's32[1]{0}', space=sflag, size = 0x4, scoped, tag = 'scoped memory for tpu_custom_call.1']
    #allocation5 [shape = 'u8[262144]{0}', space=vmem, size = 0x40000, scoped, tag = 'input window, operand 1, single buffered']
    #allocation6 [shape = 's32[1]{0}', space=sflag, size = 0x4, scoped, tag = 'scoped memory for tpu_custom_call.1']
    %12 = vsyncpa [#allocation4], 0
    %13 = vsyncpa [#allocation6], 0
    // Predicated region
    $region2: #{tpu_custom_call.1} parent=1 // pred_check
      _
    $region3: #{tpu_custom_call.1} parent=1 // pred_check_branch
      %15 = sbr.rel (0) target = $region5
    $region4: #{tpu_custom_call.1} parent=1 // pred_region
      %17 = vsyncadd [#allocation4], 0
      %s18 = sshll.u32 %s0, 4
      %s19 = int_to_ptr.hbm [resolvable:$true] %s18
      %s20 = sshll.u32 [#allocation3], 4
      %s21 = int_to_ptr.vmem [resolvable:$true] %s20
      %26 = dma.hbm_to_vmem [thread:$0]  %s19, 2048, %s21, [#allocation4], 512, 512, 32
    $region5: #{tpu_custom_call.1} parent=1 // pred_fallthru
      _
    // Predicated region
    $region6: #{tpu_custom_call.1} parent=1 // pred_check
      _
    $region7: #{tpu_custom_call.1} parent=1 // pred_check_branch
      %28 = sbr.rel (0) target = $region9
    $region8: #{tpu_custom_call.1} parent=1 // pred_region
      %30 = vsyncadd [#allocation6], 0
      %s31 = sshll.u32 %s1, 4
      %s32 = int_to_ptr.hbm [resolvable:$true] %s31
      %s33 = sshll.u32 [#allocation5], 4
      %s34 = int_to_ptr.vmem [resolvable:$true] %s33
      %39 = dma.hbm_to_vmem [thread:$0]  %s32, 8192, %s34, [#allocation6], 128, 128, 8
    $region9: #{tpu_custom_call.1} parent=1 // pred_fallthru
      _
    // Predicated region
    $region10: #{tpu_custom_call.1} parent=1 // pred_check
      _
    $region11: #{tpu_custom_call.1} parent=1 // pred_check_branch
      %41 = sbr.rel (0) target = $region13
    $region12: #{tpu_custom_call.1} parent=1 // pred_region
      _
    $region13: #{tpu_custom_call.1} parent=1 // pred_fallthru
      _
    // Predicated region
    $region14: #{tpu_custom_call.1} parent=1 // pred_check
      _
    $region15: #{tpu_custom_call.1} parent=1 // pred_check_branch
      %43 = sbr.rel (0) target = $region17
    $region16: #{tpu_custom_call.1} parent=1 // pred_region
      _
    $region17: #{tpu_custom_call.1} parent=1 // pred_fallthru
      _
    // Predicated region
    $region18: #{tpu_custom_call.1} parent=1 // pred_check
      _
    $region19: #{tpu_custom_call.1} parent=1 // pred_check_branch
      %45 = sbr.rel (0) target = $region21
    $region20: #{tpu_custom_call.1} parent=1 // pred_region
      _
    $region21: #{tpu_custom_call.1} parent=1 // pred_fallthru
      _
    // Predicated region
    $region22: #{tpu_custom_call.1} parent=1 // pred_check
      _
    $region23: #{tpu_custom_call.1} parent=1 // pred_check_branch
      %47 = sbr.rel (0) target = $region25
    $region24: #{tpu_custom_call.1} parent=1 // pred_region
      %49 = dma.done [#allocation4], 2048
    $region25: #{tpu_custom_call.1} parent=1 // pred_fallthru
      _
    // Predicated region
    $region26: #{tpu_custom_call.1} parent=1 // pred_check
      _
    $region27: #{tpu_custom_call.1} parent=1 // pred_check_branch
      %51 = sbr.rel (0) target = $region29
    $region28: #{tpu_custom_call.1} parent=1 // pred_region
      %53 = dma.done [#allocation6], 8192
    $region29: #{tpu_custom_call.1} parent=1 // pred_fallthru
      _
    %v54 = vld [vmem:[#allocation3] sm:$0xff]
    %v55 = vld [vmem:[#allocation3 + $0x8] sm:$0xff]
    %v56 = vld [vmem:[#allocation3 + $0x10] sm:$0xff]
    %v57 = vld [vmem:[#allocation3 + $0x18] sm:$0xff]
    %v58 = vld [vmem:[#allocation3 + $0x20] sm:$0xff]
    %v59 = vld [vmem:[#allocation3 + $0x28] sm:$0xff]
    %v60 = vld [vmem:[#allocation3 + $0x30] sm:$0xff]
    %v61 = vld [vmem:[#allocation3 + $0x38] sm:$0xff]
    %v62 = vld [vmem:[#allocation3 + $0x40] sm:$0xff]
    %v63 = vld [vmem:[#allocation3 + $0x48] sm:$0xff]
    %v64 = vld [vmem:[#allocation3 + $0x50] sm:$0xff]
    %v65 = vld [vmem:[#allocation3 + $0x58] sm:$0xff]
    %v66 = vld [vmem:[#allocation3 + $0x60] sm:$0xff]
    %v67 = vld [vmem:[#allocation3 + $0x68] sm:$0xff]
    %v68 = vld [vmem:[#allocation3 + $0x70] sm:$0xff]
    %v69 = vld [vmem:[#allocation3 + $0x78] sm:$0xff]
    %v70 = vrot.slane %v54, 4
    %v71 = vadd.f32 %v54, %v70
    %v72 = vrot.slane %v71, 2
    %v73 = vadd.f32 %v71, %v72
    %v74 = vrot.slane %v73, 1
    %v75 = vadd.f32 %v73, %v74
    %v76 = vrot.slane %v55, 4
    %v77 = vadd.f32 %v55, %v76
    %v78 = vrot.slane %v77, 2
    %v79 = vadd.f32 %v77, %v78
    %v80 = vrot.slane %v79, 1
    %v81 = vadd.f32 %v79, %v80
    %v82 = vrot.slane %v56, 4
    %v83 = vadd.f32 %v56, %v82
    %v84 = vrot.slane %v83, 2
    %v85 = vadd.f32 %v83, %v84
    %v86 = vrot.slane %v85, 1
    %v87 = vadd.f32 %v85, %v86
    %v88 = vrot.slane %v57, 4
    %v89 = vadd.f32 %v57, %v88
    %v90 = vrot.slane %v89, 2
    %v91 = vadd.f32 %v89, %v90
    %v92 = vrot.slane %v91, 1
    %v93 = vadd.f32 %v91, %v92
    %v94 = vrot.slane %v58, 4
    %v95 = vadd.f32 %v58, %v94
    %v96 = vrot.slane %v95, 2
    %v97 = vadd.f32 %v95, %v96
    %v98 = vrot.slane %v97, 1
    %v99 = vadd.f32 %v97, %v98
    %v100 = vrot.slane %v59, 4
    %v101 = vadd.f32 %v59, %v100
    %v102 = vrot.slane %v101, 2
    %v103 = vadd.f32 %v101, %v102
    %v104 = vrot.slane %v103, 1
    %v105 = vadd.f32 %v103, %v104
    %v106 = vrot.slane %v60, 4
    %v107 = vadd.f32 %v60, %v106
    %v108 = vrot.slane %v107, 2
    %v109 = vadd.f32 %v107, %v108
    %v110 = vrot.slane %v109, 1
    %v111 = vadd.f32 %v109, %v110
    %v112 = vrot.slane %v61, 4
    %v113 = vadd.f32 %v61, %v112
    %v114 = vrot.slane %v113, 2
    %v115 = vadd.f32 %v113, %v114
    %v116 = vrot.slane %v115, 1
    %v117 = vadd.f32 %v115, %v116
    %v118 = vrot.slane %v62, 4
    %v119 = vadd.f32 %v62, %v118
    %v120 = vrot.slane %v119, 2
    %v121 = vadd.f32 %v119, %v120
    %v122 = vrot.slane %v121, 1
    %v123 = vadd.f32 %v121, %v122
    %v124 = vrot.slane %v63, 4
    %v125 = vadd.f32 %v63, %v124
    %v126 = vrot.slane %v125, 2
    %v127 = vadd.f32 %v125, %v126
    %v128 = vrot.slane %v127, 1
    %v129 = vadd.f32 %v127, %v128
    %v130 = vrot.slane %v64, 4
    %v131 = vadd.f32 %v64, %v130
    %v132 = vrot.slane %v131, 2
    %v133 = vadd.f32 %v131, %v132
    %v134 = vrot.slane %v133, 1
    %v135 = vadd.f32 %v133, %v134
    %v136 = vrot.slane %v65, 4
    %v137 = vadd.f32 %v65, %v136
    %v138 = vrot.slane %v137, 2
    %v139 = vadd.f32 %v137, %v138
    %v140 = vrot.slane %v139, 1
    %v141 = vadd.f32 %v139, %v140
    %v142 = vrot.slane %v66, 4
    %v143 = vadd.f32 %v66, %v142
    %v144 = vrot.slane %v143, 2
    %v145 = vadd.f32 %v143, %v144
    %v146 = vrot.slane %v145, 1
    %v147 = vadd.f32 %v145, %v146
    %v148 = vrot.slane %v67, 4
    %v149 = vadd.f32 %v67, %v148
    %v150 = vrot.slane %v149, 2
    %v151 = vadd.f32 %v149, %v150
    %v152 = vrot.slane %v151, 1
    %v153 = vadd.f32 %v151, %v152
    %v154 = vrot.slane %v68, 4
    %v155 = vadd.f32 %v68, %v154
    %v156 = vrot.slane %v155, 2
    %v157 = vadd.f32 %v155, %v156
    %v158 = vrot.slane %v157, 1
    %v159 = vadd.f32 %v157, %v158
    %v160 = vrot.slane %v69, 4
    %v161 = vadd.f32 %v69, %v160
    %v162 = vrot.slane %v161, 2
    %v163 = vadd.f32 %v161, %v162
    %v164 = vrot.slane %v163, 1
    %v165 = vadd.f32 %v163, %v164
    %v166 = vmul.f32 %v75, 0.125
    %v167 = vmul.f32 %v81, 0.125
    %v168 = vmul.f32 %v87, 0.125
    %v169 = vmul.f32 %v93, 0.125
    %v170 = vmul.f32 %v99, 0.125
    %v171 = vmul.f32 %v105, 0.125
    %v172 = vmul.f32 %v111, 0.125
    %v173 = vmul.f32 %v117, 0.125
    %v174 = vmul.f32 %v123, 0.125
    %v175 = vmul.f32 %v129, 0.125
    %v176 = vmul.f32 %v135, 0.125
    %v177 = vmul.f32 %v141, 0.125
    %v178 = vmul.f32 %v147, 0.125
    %v179 = vmul.f32 %v153, 0.125
    %v180 = vmul.f32 %v159, 0.125
    %v181 = vmul.f32 %v165, 0.125
    %v182 = vld [vmem:[#allocation5] sm:$0xff]
    %v183 = vld [vmem:[#allocation5 + $0x8] sm:$0xff]
    %v184 = vld [vmem:[#allocation5 + $0x10] sm:$0xff]
    %v185 = vld [vmem:[#allocation5 + $0x18] sm:$0xff]
    %v186 = vld [vmem:[#allocation5 + $0x20] sm:$0xff]
    %v187 = vld [vmem:[#allocation5 + $0x28] sm:$0xff]
    %v188 = vld [vmem:[#allocation5 + $0x30] sm:$0xff]
    %v189 = vld [vmem:[#allocation5 + $0x38] sm:$0xff]
    %v190 = vld [vmem:[#allocation5 + $0x40] sm:$0xff]
    %v191 = vld [vmem:[#allocation5 + $0x48] sm:$0xff]
    %v192 = vld [vmem:[#allocation5 + $0x50] sm:$0xff]
    %v193 = vld [vmem:[#allocation5 + $0x58] sm:$0xff]
    %v194 = vld [vmem:[#allocation5 + $0x60] sm:$0xff]
    %v195 = vld [vmem:[#allocation5 + $0x68] sm:$0xff]
    %v196 = vld [vmem:[#allocation5 + $0x70] sm:$0xff]
    %v197 = vld [vmem:[#allocation5 + $0x78] sm:$0xff]
    %v198 = vld [vmem:[#allocation5 + $0x80] sm:$0xff]
    %v199 = vld [vmem:[#allocation5 + $0x88] sm:$0xff]
    %v200 = vld [vmem:[#allocation5 + $0x90] sm:$0xff]
    %v201 = vld [vmem:[#allocation5 + $0x98] sm:$0xff]
    %v202 = vld [vmem:[#allocation5 + $0xa0] sm:$0xff]
    %v203 = vld [vmem:[#allocation5 + $0xa8] sm:$0xff]
    %v204 = vld [vmem:[#allocation5 + $0xb0] sm:$0xff]
    %v205 = vld [vmem:[#allocation5 + $0xb8] sm:$0xff]
    %v206 = vld [vmem:[#allocation5 + $0xc0] sm:$0xff]
    %v207 = vld [vmem:[#allocation5 + $0xc8] sm:$0xff]
    %v208 = vld [vmem:[#allocation5 + $0xd0] sm:$0xff]
    %v209 = vld [vmem:[#allocation5 + $0xd8] sm:$0xff]
    %v210 = vld [vmem:[#allocation5 + $0xe0] sm:$0xff]
    %v211 = vld [vmem:[#allocation5 + $0xe8] sm:$0xff]
    %v212 = vld [vmem:[#allocation5 + $0xf0] sm:$0xff]
    %v213 = vld [vmem:[#allocation5 + $0xf8] sm:$0xff]
    %v214 = vld [vmem:[#allocation5 + $0x100] sm:$0xff]
    %v215 = vld [vmem:[#allocation5 + $0x108] sm:$0xff]
    %v216 = vld [vmem:[#allocation5 + $0x110] sm:$0xff]
    %v217 = vld [vmem:[#allocation5 + $0x118] sm:$0xff]
    %v218 = vld [vmem:[#allocation5 + $0x120] sm:$0xff]
    %v219 = vld [vmem:[#allocation5 + $0x128] sm:$0xff]
    %v220 = vld [vmem:[#allocation5 + $0x130] sm:$0xff]
    %v221 = vld [vmem:[#allocation5 + $0x138] sm:$0xff]
    %v222 = vld [vmem:[#allocation5 + $0x140] sm:$0xff]
    %v223 = vld [vmem:[#allocation5 + $0x148] sm:$0xff]
    %v224 = vld [vmem:[#allocation5 + $0x150] sm:$0xff]
    %v225 = vld [vmem:[#allocation5 + $0x158] sm:$0xff]
    %v226 = vld [vmem:[#allocation5 + $0x160] sm:$0xff]
    %v227 = vld [vmem:[#allocation5 + $0x168] sm:$0xff]
    %v228 = vld [vmem:[#allocation5 + $0x170] sm:$0xff]
    %v229 = vld [vmem:[#allocation5 + $0x178] sm:$0xff]
    %v230 = vld [vmem:[#allocation5 + $0x180] sm:$0xff]
    %v231 = vld [vmem:[#allocation5 + $0x188] sm:$0xff]
    %v232 = vld [vmem:[#allocation5 + $0x190] sm:$0xff]
    %v233 = vld [vmem:[#allocation5 + $0x198] sm:$0xff]
    %v234 = vld [vmem:[#allocation5 + $0x1a0] sm:$0xff]
    %v235 = vld [vmem:[#allocation5 + $0x1a8] sm:$0xff]
    %v236 = vld [vmem:[#allocation5 + $0x1b0] sm:$0xff]
    %v237 = vld [vmem:[#allocation5 + $0x1b8] sm:$0xff]
    %v238 = vld [vmem:[#allocation5 + $0x1c0] sm:$0xff]
    %v239 = vld [vmem:[#allocation5 + $0x1c8] sm:$0xff]
    %v240 = vld [vmem:[#allocation5 + $0x1d0] sm:$0xff]
    %v241 = vld [vmem:[#allocation5 + $0x1d8] sm:$0xff]
    %v242 = vld [vmem:[#allocation5 + $0x1e0] sm:$0xff]
    %v243 = vld [vmem:[#allocation5 + $0x1e8] sm:$0xff]
    %v244 = vld [vmem:[#allocation5 + $0x1f0] sm:$0xff]
    %v245 = vld [vmem:[#allocation5 + $0x1f8] sm:$0xff]
    %v246 = vld [vmem:[%s2] sm:$0x1]
    %v248 = vperm.slane %v246, 0
    %vm266 = vcmask 1041409
    %v267 = vsel %vm266, %v170, %v166
    %vm268 = vcmask 1042434
    %v269 = vsel %vm268, %v174, %v267
    %vm270 = vcmask 1043459
    %v271 = vsel %vm270, %v178, %v269
    %v272 = vsel %vm266, %v171, %v167
    %v273 = vsel %vm268, %v175, %v272
    %v274 = vsel %vm270, %v179, %v273
    %v275 = vsel %vm266, %v172, %v168
    %v276 = vsel %vm268, %v176, %v275
    %v277 = vsel %vm270, %v180, %v276
    %v278 = vsel %vm266, %v173, %v169
    %v279 = vsel %vm268, %v177, %v278
    %v280 = vsel %vm270, %v181, %v279
    %285 = vmatpush.msra.mxu0 %v197
    %286 = vmatpush.msra.mxu0 %v196
    %287 = vmatpush.msra.mxu0 %v195
    %288 = vmatpush.msra.mxu0 %v194
    %289 = vmatpush.msra.mxu0 %v193
    %290 = vmatpush.msra.mxu0 %v192
    %291 = vmatpush.msra.mxu0 %v191
    %292 = vmatpush.msra.mxu0 %v190
    %293 = vmatpush.msra.mxu0 %v189
    %294 = vmatpush.msra.mxu0 %v188
    %295 = vmatpush.msra.mxu0 %v187
    %296 = vmatpush.msra.mxu0 %v186
    %297 = vmatpush.msra.mxu0 %v185
    %298 = vmatpush.msra.mxu0 %v184
    %299 = vmatpush.msra.mxu0 %v183
    %300 = vmatpush.msra.mxu0 %v182
    %301 = vmatmul.f32.gmra.mxu0 %v271
    %v302 = vpop.f32.mrf.mxu0
    %v303 = vadd.f32 %v248, %v302
    %304 = vdwg.mxu0
    %305 = vmatpush.msra.mxu0 %v213
    %306 = vmatpush.msra.mxu0 %v212
    %307 = vmatpush.msra.mxu0 %v211
    %308 = vmatpush.msra.mxu0 %v210
    %309 = vmatpush.msra.mxu0 %v209
    %310 = vmatpush.msra.mxu0 %v208
    %311 = vmatpush.msra.mxu0 %v207
    %312 = vmatpush.msra.mxu0 %v206
    %313 = vmatpush.msra.mxu0 %v205
    %314 = vmatpush.msra.mxu0 %v204
    %315 = vmatpush.msra.mxu0 %v203
    %316 = vmatpush.msra.mxu0 %v202
    %317 = vmatpush.msra.mxu0 %v201
    %318 = vmatpush.msra.mxu0 %v200
    %319 = vmatpush.msra.mxu0 %v199
    %320 = vmatpush.msra.mxu0 %v198
    %321 = vmatmul.f32.gmra.mxu0 %v274
    %v322 = vpop.f32.mrf.mxu0
    %v323 = vadd.f32 %v303, %v322
    %324 = vdwg.mxu0
    %325 = vmatpush.msra.mxu0 %v229
    %326 = vmatpush.msra.mxu0 %v228
    %327 = vmatpush.msra.mxu0 %v227
    %328 = vmatpush.msra.mxu0 %v226
    %329 = vmatpush.msra.mxu0 %v225
    %330 = vmatpush.msra.mxu0 %v224
    %331 = vmatpush.msra.mxu0 %v223
    %332 = vmatpush.msra.mxu0 %v222
    %333 = vmatpush.msra.mxu0 %v221
    %334 = vmatpush.msra.mxu0 %v220
    %335 = vmatpush.msra.mxu0 %v219
    %336 = vmatpush.msra.mxu0 %v218
    %337 = vmatpush.msra.mxu0 %v217
    %338 = vmatpush.msra.mxu0 %v216
    %339 = vmatpush.msra.mxu0 %v215
    %340 = vmatpush.msra.mxu0 %v214
    %341 = vmatmul.f32.gmra.mxu0 %v277
    %v342 = vpop.f32.mrf.mxu0
    %v343 = vadd.f32 %v323, %v342
    %344 = vdwg.mxu0
    %345 = vmatpush.msra.mxu0 %v245
    %346 = vmatpush.msra.mxu0 %v244
    %347 = vmatpush.msra.mxu0 %v243
    %348 = vmatpush.msra.mxu0 %v242
    %349 = vmatpush.msra.mxu0 %v241
    %350 = vmatpush.msra.mxu0 %v240
    %351 = vmatpush.msra.mxu0 %v239
    %352 = vmatpush.msra.mxu0 %v238
    %353 = vmatpush.msra.mxu0 %v237
    %354 = vmatpush.msra.mxu0 %v236
    %355 = vmatpush.msra.mxu0 %v235
    %356 = vmatpush.msra.mxu0 %v234
    %357 = vmatpush.msra.mxu0 %v233
    %358 = vmatpush.msra.mxu0 %v232
    %359 = vmatpush.msra.mxu0 %v231
    %360 = vmatpush.msra.mxu0 %v230
    %361 = vmatmul.f32.gmra.mxu0 %v280
    %v362 = vpop.f32.mrf.mxu0
    %v363 = vadd.f32 %v343, %v362
    %364 = vdwg.mxu0
    %v365 = vmax.f32 %v363, 0.0
    %v366 = vld [vmem:[%s3] sm:$0x1]
    %v368 = vperm.slane %v366, 0
    %v370 = vmul.f32 %v365, %v368
    %vm371 = vcmask 1043456
    %v372 = vsel %vm371, %v370, 0.0
    %373 = vadd.xlane.f32.xlu0 %v372
    %v374 = vpop.xlane.xlu0 %373
    %v375 = vld [vmem:[#allocation2] sm:$0x1]
    %v377 = vperm.slane %v375, 0
    %v379 = vadd.f32 %v374, %v377
    %v380 = vmax.f32 %v379, 0.0
    %v381 = vsub.f32 0.0, %v380
    %v382 = vmul.f32 %v381, 1.442695
    %v383 = vpow.pop %v382
    %v384 = vadd.f32 %v383, 1.0
    %v385 = vrcp.pop %v384
    %v386 = vmul.f32 %v384, %v385
    %v387 = vsub.f32 1.0, %v386
    %v388 = vmul.f32 %v385, %v387
    %v389 = vadd.f32 %v385, %v388
    %vm390 = vweird.f32 %v384
    %vm391 = vweird.f32 %v385
    %vm392 = vmor %vm390, %vm391
    %v393 = vsel %vm392, %v385, %v389
    %v394 = vand.u32 2147483647, %v384
    %vm395 = vcmp.eq.f32.partialorder %v394, 8.507059e+37
    %v396 = vand.u32 %v384, 2147483648
    %v397 = vor.u32 1.1754944e-38, %v396
    %v398 = vsel %vm395, %v397, %v393
    %v399 = vmul.f32 1.0, %v398
    %vm400 = vcmask 3072
    %401 = vst.msk [vmem:[%s5] sm:$0xf] %vm400, %v399
    // Predicated region
    $region30: #{tpu_custom_call.1} parent=1 // pred_check
      _
    $region31: #{tpu_custom_call.1} parent=1 // pred_check_branch
      %403 = sbr.rel (0) target = $region33
    $region32: #{tpu_custom_call.1} parent=1 // pred_region
      _
    $region33: #{tpu_custom_call.1} parent=1 // pred_fallthru
      _
    // Predicated region
    $region34: #{tpu_custom_call.1} parent=1 // pred_check
      _
    $region35: #{tpu_custom_call.1} parent=1 // pred_check_branch
      %405 = sbr.rel (0) target = $region37
    $region36: #{tpu_custom_call.1} parent=1 // pred_region
      _
    $region37: #{tpu_custom_call.1} parent=1 // pred_fallthru
      _
    %406 = vsyncpa [#allocation4], 1
    %407 = vsyncpa [#allocation6], 1

</llo_original>
